<compile_context>
chip_gen: v7x
topology: tpu7x:2x2x1
jax: 0.10.0
libtpu: 0.0.40
codegen_flags: <defaults>
</compile_context>

<pallas_src>
from functools import partial

import jax
import jax.numpy as jnp
import numpy as np
from jax import lax
from jax.experimental import pallas as pl
from jax.experimental.pallas import tpu as pltpu


def layernorm_kernel(x_ref, gamma_ref, beta_ref, o_ref, *, eps):
    # x_ref: (R, H) tile of rows; gamma/beta: (1, H) broadcast over rows.
    x = x_ref[...].astype(jnp.float32)
    gamma = gamma_ref[...].astype(jnp.float32)
    beta = beta_ref[...].astype(jnp.float32)

    u = jnp.mean(x, axis=-1, keepdims=True)          # (R, 1) row mean
    d = x - u
    s = jnp.mean(d * d, axis=-1, keepdims=True)      # (R, 1) biased variance
    inv = lax.rsqrt(s + eps)                         # EUP rsqrt (eps inside sqrt)
    o_ref[...] = (gamma * (d * inv) + beta).astype(o_ref.dtype)


def _pick_row_tile(n_rows, hidden, itemsize, vmem_budget_bytes=4 << 20):
    """Largest sublane-aligned row tile whose x-block fits the VMEM budget."""
    if n_rows <= 8:
        return n_rows  # full-array block (exempt from the (8,128) rule)
    bytes_per_row = max(hidden * max(itemsize, 4), 1)  # f32 compute copy bound
    tile = vmem_budget_bytes // bytes_per_row
    tile = max(8, min(n_rows, (tile // 8) * 8))
    if tile >= n_rows:
        return n_rows
    return tile


def bert_layer_norm(x, weight, bias, *, eps=1e-12):
    """LayerNorm over the last axis of x; weight/bias have shape (H,)."""
    orig_shape = x.shape
    H = int(orig_shape[-1])
    N = 1
    for dim in orig_shape[:-1]:
        N *= int(dim)

    x2 = x.reshape(N, H)
    gamma = weight.reshape(1, H)
    beta = bias.reshape(1, H)

    tile = _pick_row_tile(N, H, x.dtype.itemsize)
    grid = (pl.cdiv(N, tile),)

    out = pl.pallas_call(
        partial(layernorm_kernel, eps=eps),
        out_shape=jax.ShapeDtypeStruct((N, H), x.dtype),
        grid_spec=pltpu.PrefetchScalarGridSpec(
            num_scalar_prefetch=0,
            grid=grid,
            in_specs=[
                pl.BlockSpec((tile, H), lambda i: (i, 0)),   # x rows (pipelined)
                pl.BlockSpec((1, H), lambda i: (0, 0)),      # gamma (resident)
                pl.BlockSpec((1, H), lambda i: (0, 0)),      # beta  (resident)
            ],
            out_specs=pl.BlockSpec((tile, H), lambda i: (i, 0)),
        ),
        compiler_params=pltpu.CompilerParams(
            dimension_semantics=("parallel",),
            vmem_limit_bytes=64 << 20,
        ),
    )(x2, gamma, beta)

    return out.reshape(orig_shape)


def reference(x, weight, bias, eps=1e-12):
    """Pure-JAX reference matching the PyTorch BertLayerNorm forward."""
    u = jnp.mean(x, axis=-1, keepdims=True)
    s = jnp.mean((x - u) ** 2, axis=-1, keepdims=True)
    return weight * ((x - u) / jnp.sqrt(s + eps)) + bias


if __name__ == "__main__":
    B, S, H = 2, 8, 32

    key = jax.random.PRNGKey(0)
    kx, kg, kb = jax.random.split(key, 3)

    x = jax.random.normal(kx, (B, S, H), dtype=jnp.float32)
    weight = 1.0 + 0.1 * jax.random.normal(kg, (H,), dtype=jnp.float32)
    bias = 0.1 * jax.random.normal(kb, (H,), dtype=jnp.float32)

    out = bert_layer_norm(x, weight, bias, eps=1e-12)
    jax.block_until_ready(out)

    ref_out = reference(x, weight, bias, eps=1e-12)
    np.testing.assert_allclose(np.asarray(out), np.asarray(ref_out),
                               rtol=1e-5, atol=1e-5)

    print("KERNEL_OK")
</pallas_src>

<mosaic_0001>
module attributes {stable_mosaic.version = 11 : i64} {
  func.func @layernorm_kernel(%arg0: i32, %arg1: memref<16x32xf32, #tpu.memory_space<vmem>>, %arg2: memref<1x32xf32, #tpu.memory_space<vmem>>, %arg3: memref<1x32xf32, #tpu.memory_space<vmem>>, %arg4: memref<16x32xf32, #tpu.memory_space<vmem>>) attributes {dimension_semantics = [#tpu.dimension_semantics<parallel>], iteration_bounds = array<i64: 1>, scalar_prefetch = 0 : i64, scratch_operands = 0 : i64, tpu.core_type = #tpu.core_type<tc>, window_params = [{transform_indices = @transform_0, window_bounds = array<i64: 16, 32>}, {pipeline_mode = #tpu.pipeline_mode<synchronous>, transform_indices = @transform_1, window_bounds = array<i64: 1, 32>}, {pipeline_mode = #tpu.pipeline_mode<synchronous>, transform_indices = @transform_2, window_bounds = array<i64: 1, 32>}, {transform_indices = @transform_3, window_bounds = array<i64: 16, 32>}]} {
    %c0 = arith.constant 0 : index
    %c0_0 = arith.constant 0 : index
    %0 = vector.load %arg1[%c0, %c0_0] : memref<16x32xf32, #tpu.memory_space<vmem>>, vector<16x32xf32>
    %c0_1 = arith.constant 0 : index
    %c0_2 = arith.constant 0 : index
    %1 = vector.load %arg2[%c0_1, %c0_2] : memref<1x32xf32, #tpu.memory_space<vmem>>, vector<1x32xf32>
    %c0_3 = arith.constant 0 : index
    %c0_4 = arith.constant 0 : index
    %2 = vector.load %arg3[%c0_3, %c0_4] : memref<1x32xf32, #tpu.memory_space<vmem>>, vector<1x32xf32>
    %cst = arith.constant dense<0.000000e+00> : vector<16xf32>
    %3 = vector.multi_reduction <add>, %0, %cst [1] : vector<16x32xf32> to vector<16xf32>
    %4 = vector.shape_cast %3 : vector<16xf32> to vector<16x1xf32>
    %cst_5 = arith.constant 3.200000e+01 : f32
    %5 = vector.broadcast %cst_5 : f32 to vector<16x1xf32>
    %6 = arith.divf %4, %5 : vector<16x1xf32>
    %7 = vector.broadcast %6 : vector<16x1xf32> to vector<16x32xf32>
    %8 = arith.subf %0, %7 : vector<16x32xf32>
    %9 = arith.mulf %8, %8 : vector<16x32xf32>
    %cst_6 = arith.constant dense<0.000000e+00> : vector<16xf32>
    %10 = vector.multi_reduction <add>, %9, %cst_6 [1] : vector<16x32xf32> to vector<16xf32>
    %11 = vector.shape_cast %10 : vector<16xf32> to vector<16x1xf32>
    %cst_7 = arith.constant 3.200000e+01 : f32
    %12 = vector.broadcast %cst_7 : f32 to vector<16x1xf32>
    %13 = arith.divf %11, %12 : vector<16x1xf32>
    %cst_8 = arith.constant 9.99999996E-13 : f32
    %14 = vector.broadcast %cst_8 : f32 to vector<16x1xf32>
    %15 = arith.addf %13, %14 : vector<16x1xf32>
    %16 = math.rsqrt %15 : vector<16x1xf32>
    %17 = vector.broadcast %16 : vector<16x1xf32> to vector<16x32xf32>
    %18 = arith.mulf %8, %17 : vector<16x32xf32>
    %19 = vector.broadcast %1 : vector<1x32xf32> to vector<16x32xf32>
    %20 = arith.mulf %19, %18 : vector<16x32xf32>
    %21 = vector.broadcast %2 : vector<1x32xf32> to vector<16x32xf32>
    %22 = arith.addf %20, %21 : vector<16x32xf32>
    %c0_9 = arith.constant 0 : index
    %c0_10 = arith.constant 0 : index
    %23 = vector.load %arg4[%c0_9, %c0_10] : memref<16x32xf32, #tpu.memory_space<vmem>>, vector<16x32xf32>
    tpu.vector_store %arg4[%c0_9, %c0_10], %22 {strides = array<i32>} : memref<16x32xf32, #tpu.memory_space<vmem>>, vector<16x32xf32>,
    return
  }
  func.func @transform_0(%arg0: i32) -> (i32, i32) {
    %c0_i32 = arith.constant 0 : i32
    %c0_i32_0 = arith.constant 0 : i32
    return %arg0, %c0_i32 : i32, i32
  }
  func.func @transform_1(%arg0: i32) -> (i32, i32) {
    %c0_i32 = arith.constant 0 : i32
    %c0_i32_0 = arith.constant 0 : i32
    %c0_i32_1 = arith.constant 0 : i32
    return %c0_i32, %c0_i32_0 : i32, i32
  }
  func.func @transform_2(%arg0: i32) -> (i32, i32) {
    %c0_i32 = arith.constant 0 : i32
    %c0_i32_0 = arith.constant 0 : i32
    %c0_i32_1 = arith.constant 0 : i32
    return %c0_i32, %c0_i32_0 : i32, i32
  }
  func.func @transform_3(%arg0: i32) -> (i32, i32) {
    %c0_i32 = arith.constant 0 : i32
    %c0_i32_0 = arith.constant 0 : i32
    return %arg0, %c0_i32 : i32, i32
  }
}

</mosaic_0001>

<llo_original>
// kernel: tpu_custom_call.1
$region0: #{tpu_custom_call.1}
  #allocation0 [shape = 'u32[]', space=smem, size = 0x4, offset = 0x4, fixed_abs, tag = 'smem constant byte address 0x4 - core index']
  #allocation1 [shape = 'u32[144,128]{1,0:T(1,128)}', space=vmem, size = 0x12000, scoped, tag = 'internal scratch']
  %s0 = inlined_call_operand.hbm [shape: f32[16,32], index: 0, kind: input, shape index: {}]
  %s1 = inlined_call_operand.hbm [shape: f32[1,32], index: 1, kind: input, shape index: {}]
  %s2 = inlined_call_operand.hbm [shape: f32[1,32], index: 2, kind: input, shape index: {}]
  %s3 = inlined_call_operand.hbm [shape: f32[16,32], index: 3, kind: output, shape index: {}]
  %s4 = sld [smem:[#allocation0]]
  $region34: #{tpu_custom_call.1} parent=0
    _
  %s6 = ssub.s32 1, %s4
  %s7 = scalar_select 0, %s6, %s4
  $region1: #{tpu_custom_call.1} parent=0
    #allocation2 [shape = 'u8[8192]{0}', space=vmem, size = 0x2000, scoped, tag = 'input window, operand 0, single buffered']
    #allocation3 [shape = 's32[1]{0}', space=sflag, size = 0x4, scoped, tag = 'scoped memory for tpu_custom_call.1']
    #allocation4 [shape = 's32[1]{0}', space=sflag, size = 0x4, scoped, tag = 'scoped memory for tpu_custom_call.1']
    #allocation5 [shape = 'u8[512]{0}', space=vmem, size = 0x400, scoped, tag = 'input window, operand 1, single buffered']
    #allocation6 [shape = 's32[1]{0}', space=sflag, size = 0x4, scoped, tag = 'scoped memory for tpu_custom_call.1']
    #allocation7 [shape = 'u8[512]{0}', space=vmem, size = 0x400, scoped, tag = 'input window, operand 2, single buffered']
    #allocation8 [shape = 'u8[8192]{0}', space=vmem, size = 0x2000, scoped, tag = 'output window, operand 0, single buffered']
    %8 = vsyncpa [#allocation3], 0
    %9 = vsyncpa [#allocation6], 0
    %10 = vsyncpa [#allocation4], 0
    // Predicated region
    $region2: #{tpu_custom_call.1} parent=1 // pred_check
      _
    $region3: #{tpu_custom_call.1} parent=1 // pred_check_branch
      %12 = sbr.rel (0) target = $region5
    $region4: #{tpu_custom_call.1} parent=1 // pred_region
      %s14 = ssub.s32 256, 256
      %15 = vsyncadd [#allocation3], %s14
      %s16 = sshll.u32 [#allocation2], 4
      %s17 = int_to_ptr.vmem [resolvable:$true] %s16
      %22 = dma.hbm_to_vmem [thread:$0]  %s0, 256, %s17, [#allocation3], 128, 128, 8
    $region5: #{tpu_custom_call.1} parent=1 // pred_fallthru
      _
    // Predicated region
    $region6: #{tpu_custom_call.1} parent=1 // pred_check
      _
    $region7: #{tpu_custom_call.1} parent=1 // pred_check_branch
      %24 = sbr.rel (0) target = $region9
    $region8: #{tpu_custom_call.1} parent=1 // pred_region
      %s26 = ssub.s32 16, 16
      %27 = vsyncadd [#allocation6], %s26
      %s29 = sshll.u32 [#allocation5], 4
      %s30 = int_to_ptr.vmem [resolvable:$true] %s29
      %32 = dma.hbm_to_vmem [thread:$0]  %s1, 16, %s30, [#allocation6]
    $region9: #{tpu_custom_call.1} parent=1 // pred_fallthru
      _
    // Predicated region
    $region10: #{tpu_custom_call.1} parent=1 // pred_check
      _
    $region11: #{tpu_custom_call.1} parent=1 // pred_check_branch
      %34 = sbr.rel (0) target = $region13
    $region12: #{tpu_custom_call.1} parent=1 // pred_region
      %s36 = ssub.s32 16, 16
      %37 = vsyncadd [#allocation6], %s36
      %s39 = sshll.u32 [#allocation7], 4
      %s40 = int_to_ptr.vmem [resolvable:$true] %s39
      %42 = dma.hbm_to_vmem [thread:$0]  %s2, 16, %s40, [#allocation6]
    $region13: #{tpu_custom_call.1} parent=1 // pred_fallthru
      _
    // Predicated region
    $region14: #{tpu_custom_call.1} parent=1 // pred_check
      _
    $region15: #{tpu_custom_call.1} parent=1 // pred_check_branch
      %44 = sbr.rel (0) target = $region17
    $region16: #{tpu_custom_call.1} parent=1 // pred_region
      %45 = dma.done [#allocation3], 256
    $region17: #{tpu_custom_call.1} parent=1 // pred_fallthru
      _
    // Predicated region
    $region18: #{tpu_custom_call.1} parent=1 // pred_check
      _
    $region19: #{tpu_custom_call.1} parent=1 // pred_check_branch
      %47 = sbr.rel (0) target = $region21
    $region20: #{tpu_custom_call.1} parent=1 // pred_region
      %48 = dma.done [#allocation6], 16
    $region21: #{tpu_custom_call.1} parent=1 // pred_fallthru
      _
    // Predicated region
    $region22: #{tpu_custom_call.1} parent=1 // pred_check
      _
    $region23: #{tpu_custom_call.1} parent=1 // pred_check_branch
      %50 = sbr.rel (0) target = $region25
    $region24: #{tpu_custom_call.1} parent=1 // pred_region
      %51 = dma.done [#allocation6], 16
    $region25: #{tpu_custom_call.1} parent=1 // pred_fallthru
      _
    %v52 = vld [vmem:[#allocation2] sm:$0xff]
    %v53 = vld [vmem:[#allocation2 + $0x8] sm:$0xff]
    %v54 = vld [vmem:[#allocation5] sm:$0x1]
    %v55 = vld [vmem:[#allocation7] sm:$0x1]
    %vm56 = vcmask 261120
    %v57 = vsel %vm56, %v52, 0.0
    %58 = vadd.xlane.f32.xlu0 %v57
    %v59 = vpop.xlane.xlu0 %58
    %v60 = vsel %vm56, %v53, 0.0
    %61 = vadd.xlane.f32.xlu0 %v60
    %v62 = vpop.xlane.xlu0 %61
    %v63 = vrcp.pop 32.0
    %v64 = vmul.f32 %v59, %v63
    %v65 = vmul.f32 %v62, %v63
    %v66 = vsub.f32 %v52, %v64
    %v67 = vsub.f32 %v53, %v65
    %v68 = vmul.f32 %v66, %v66
    %v69 = vmul.f32 %v67, %v67
    %v70 = vsel %vm56, %v68, 0.0
    %71 = vadd.xlane.f32.xlu0 %v70
    %v72 = vpop.xlane.xlu0 %71
    %v73 = vsel %vm56, %v69, 0.0
    %74 = vadd.xlane.f32.xlu0 %v73
    %v75 = vpop.xlane.xlu0 %74
    %v76 = vmul.f32 %v72, %v63
    %v77 = vmul.f32 %v75, %v63
    %v78 = vadd.f32 %v76, 1e-12
    %v79 = vadd.f32 %v77, 1e-12
    %v80 = vrsqrt.pop %v78
    %v81 = vrsqrt.pop %v79
    %v82 = vmul.f32 %v66, %v80
    %v83 = vmul.f32 %v67, %v81
    %v85 = vlaneseq
    %v86 = vshrl.u32 %v85, 7
    %v87 = vsub.s32 0, %v86
    %v88 = vrot.slane %v54, %v87
    %v90 = vmul.f32 %v88, %v82
    %v91 = vmul.f32 %v88, %v83
    %v93 = vlaneseq
    %v94 = vshrl.u32 %v93, 7
    %v95 = vsub.s32 0, %v94
    %v96 = vrot.slane %v55, %v95
    %v98 = vadd.f32 %v90, %v96
    %v99 = vadd.f32 %v91, %v96
    %100 = vst.msk [vmem:[#allocation8] sm:$0xff] %vm56, %v98
    %101 = vst.msk [vmem:[#allocation8 + $0x8] sm:$0xff] %vm56, %v99
    // Predicated region
    $region26: #{tpu_custom_call.1} parent=1 // pred_check
      _
    $region27: #{tpu_custom_call.1} parent=1 // pred_check_branch
      %103 = sbr.rel (0) target = $region29
    $region28: #{tpu_custom_call.1} parent=1 // pred_region
      %s105 = ssub.s32 256, 256
      %106 = vsyncadd [#allocation4], %s105
      %s107 = sshll.u32 [#allocation8], 4
      %s108 = int_to_ptr.vmem [resolvable:$true] %s107
      %113 = dma.vmem_to_hbm [thread:$0]  %s108, 256, %s3, [#allocation4], 128, 128, 8
    $region29: #{tpu_custom_call.1} parent=1 // pred_fallthru
      _
    // Predicated region
    $region30: #{tpu_custom_call.1} parent=1 // pred_check
      _
    $region31: #{tpu_custom_call.1} parent=1 // pred_check_branch
      %115 = sbr.rel (0) target = $region33
    $region32: #{tpu_custom_call.1} parent=1 // pred_region
      %116 = dma.done [#allocation4], 256
    $region33: #{tpu_custom_call.1} parent=1 // pred_fallthru
      _
    %117 = vsyncpa [#allocation3], 1
    %118 = vsyncpa [#allocation6], 1
    %119 = vsyncpa [#allocation4], 1

</llo_original>
